<compile_context>
chip_gen: v7x
topology: tpu7x:2x2x1
jax: 0.10.0
libtpu: 0.0.40
codegen_flags: <defaults>
</compile_context>

<pallas_src>
from functools import partial

import jax
import jax.numpy as jnp
from jax.experimental import pallas as pl
from jax.experimental.pallas import tpu as pltpu

STATE_DIM = 4      # CartPole-v1 observation_space.shape[0]
ACTION_DIM = 2     # CartPole-v1 action_space.n
HIDDEN = 64
LANES = 128        # TPU lane width; padded hidden width
OUT_LANES = 8      # narrow output block width (real payload is 2 lanes)

# Packed-parameter row layout (all region starts are multiples of 8):
W1_OFF = 0                      # rows 0..3  : w1 (cols 0..63)
B1_ROW = 4                      # row 4      : b1 (cols 0..63); rows 5..7 zero
W2_OFF = 8                      # rows 8..135: w2 (top-left 64x64 real)
B2_ROW = 136                    # row 136    : b2; rows 137..143 zero
W3_OFF = 144                    # rows 144..271: (w3[:,1]-w3[:,0]) broadcast to all lanes
B3_ROW = 272                    # row 272    : (b3[1]-b3[0]); rows 273..279 zero
P_ROWS = 280                    # ~140 KB f32, VMEM-resident across grid steps


def qnetwork_kernel(x_ref, p_ref, out_ref):
    """Fused MLP forward.

    x_ref:   [tb, 4]    f32 observations
    p_ref:   [280, 128] f32 packed weights/biases (grid-resident)
    out_ref: [tb, 8]    f32; lane 0 = P(action 0), lane 1 = P(action 1)
    """
    x = x_ref[...]                                            # [tb, 4]

    # ---- Layer 1: 4 -> 64 (padded to 128 lanes), on the VPU ----------------
    # K=4 would waste an MXU pass on padding; 4 outer-product multiply-adds
    # (lane-broadcast x-column times sublane-broadcast weight-row) are cheap.
    acc = p_ref[B1_ROW:B1_ROW + 1, :]                         # [1, 128] bias
    for k in range(STATE_DIM):                                # static unroll
        acc = acc + x[:, k:k + 1] * p_ref[W1_OFF + k:W1_OFF + k + 1, :]
    h1 = jnp.maximum(acc, 0.0)                                # [tb, 128]

    # ---- Layer 2: 64 -> 64 (padded 128x128), MXU + explicit bias add -------
    w2 = p_ref[W2_OFF:W2_OFF + LANES, :]                      # [128, 128]
    b2 = p_ref[B2_ROW:B2_ROW + 1, :]                          # [1, 128]
    h2 = jnp.maximum(
        jnp.dot(h1, w2, preferred_element_type=jnp.float32) + b2, 0.0)

    # ---- Layer 3 in difference form: diff = logit1 - logit0 ----------------
    # w3 rows hold (w3[:,1] - w3[:,0]) broadcast across lanes, so the matmul
    # yields the same scalar diff in every lane -> no cross-lane reductions.
    w3 = p_ref[W3_OFF:W3_OFF + LANES, :]                      # [128, 128]
    b3 = p_ref[B3_ROW:B3_ROW + 1, :]                          # [1, 128]
    diff = jnp.dot(h2, w3, preferred_element_type=jnp.float32) + b3  # [tb,128]

    # Work only on the narrow slab that is actually stored.
    d = diff[:, :OUT_LANES]                                   # [tb, 8]

    # Numerically stable 2-way softmax (== sigmoid of the logit difference):
    #   p0 = 1 / (1 + exp(diff)) computed via e = exp(-|diff|) so exp never
    #   overflows for large trained-DQN logit gaps.
    e = jnp.exp(-jnp.abs(d))
    inv = pl.reciprocal(1.0 + e, approx=True)                 # EUP slot
    p0 = jnp.where(d >= 0.0, e, 1.0) * inv
    p1 = 1.0 - p0

    lane = jax.lax.broadcasted_iota(jnp.int32, p0.shape, 1)
    out_ref[...] = jnp.where(lane == 0, p0, p1)               # lanes >= 2 unused


def pack_params(p):
    """Pack all weights + biases into one [280, 128] f32 buffer (see layout above)."""
    w1, b1 = p["w1"], jnp.reshape(p["b1"], (-1,))
    w2, b2 = p["w2"], jnp.reshape(p["b2"], (-1,))
    w3, b3 = p["w3"], jnp.reshape(p["b3"], (-1,))

    buf = jnp.zeros((P_ROWS, LANES), jnp.float32)
    buf = buf.at[W1_OFF:W1_OFF + STATE_DIM, :HIDDEN].set(w1)
    buf = buf.at[B1_ROW, :HIDDEN].set(b1)
    buf = buf.at[W2_OFF:W2_OFF + HIDDEN, :HIDDEN].set(w2)
    buf = buf.at[B2_ROW, :HIDDEN].set(b2)

    wdiff = w3[:, 1] - w3[:, 0]                               # [64]
    bdiff = b3[1] - b3[0]
    buf = buf.at[W3_OFF:W3_OFF + HIDDEN, :].set(
        jnp.broadcast_to(wdiff[:, None], (HIDDEN, LANES)))
    buf = buf.at[B3_ROW, :].set(bdiff)
    return buf


def _round_up(n, m):
    return -(-n // m) * m


@partial(jax.jit, static_argnames=("tile_b",))
def qnetwork_forward(x, packed_params, *, tile_b=2048):
    """x: [B, 4] float32; packed_params: [280, 128] from pack_params -> [B, 2] probs."""
    B = x.shape[0]
    x = x.astype(jnp.float32)

    # Tile selection: small batches run as one sublane-aligned block; large
    # batches get big tiles (amortize ~0.35 us/step) with >= 2 grid steps so
    # the v7x megacore "parallel" axis actually splits work across both TCs.
    if B <= 1024:
        tb = max(8, _round_up(B, 8))
    else:
        tb = min(tile_b, _round_up(-(-B // 2), 8))
    b_pad = _round_up(B, tb)
    if b_pad != B:
        x = jnp.pad(x, ((0, b_pad - B), (0, 0)))

    out = pl.pallas_call(
        qnetwork_kernel,
        out_shape=jax.ShapeDtypeStruct((b_pad, OUT_LANES), jnp.float32),
        grid=(b_pad // tb,),
        in_specs=[
            # activations: blocked along batch; last dim 4 == full array dim
            pl.BlockSpec((tb, STATE_DIM), lambda i: (i, 0)),
            # packed weights: whole array, resident across grid steps
            pl.BlockSpec((P_ROWS, LANES), lambda i: (0, 0)),
        ],
        # narrow output block: last dim 8 == full array dim (16x less HBM
        # writeback than a 128-lane slab)
        out_specs=pl.BlockSpec((tb, OUT_LANES), lambda i: (i, 0)),
        compiler_params=pltpu.CompilerParams(
            dimension_semantics=("parallel",),          # megacore split on v7x
            vmem_limit_bytes=32 * 1024 * 1024,          # safe on v5e/v6e/v7x
        ),
        cost_estimate=pl.CostEstimate(
            flops=2 * b_pad * (STATE_DIM * LANES + 2 * LANES * LANES),
            transcendentals=b_pad * OUT_LANES,
            bytes_accessed=(b_pad * (STATE_DIM + OUT_LANES) * 4
                            + P_ROWS * LANES * 4),
        ),
    )(x, packed_params)

    return out[:B, :ACTION_DIM]


def init_params(key):
    """nn.Linear default init (U[-1/sqrt(fan_in), +]); weights stored [in, out]."""
    ks = jax.random.split(key, 6)

    def linear(kw, kb, fan_in, fan_out):
        bound = 1.0 / jnp.sqrt(float(fan_in))
        w = jax.random.uniform(kw, (fan_in, fan_out), jnp.float32, -bound, bound)
        b = jax.random.uniform(kb, (fan_out,), jnp.float32, -bound, bound)
        return w, b

    w1, b1 = linear(ks[0], ks[1], STATE_DIM, HIDDEN)
    w2, b2 = linear(ks[2], ks[3], HIDDEN, HIDDEN)
    w3, b3 = linear(ks[4], ks[5], HIDDEN, ACTION_DIM)
    return dict(w1=w1, b1=b1, w2=w2, b2=b2, w3=w3, b3=b3)


def reference_forward(x, p):
    h1 = jnp.maximum(x @ p["w1"] + p["b1"], 0.0)
    h2 = jnp.maximum(h1 @ p["w2"] + p["b2"], 0.0)
    logits = h2 @ p["w3"] + p["b3"]
    return jax.nn.softmax(logits, axis=-1)


if __name__ == "__main__":
    key = jax.random.PRNGKey(0)
    k_params, k_x1, k_x2 = jax.random.split(key, 3)

    params = init_params(k_params)
    packed = pack_params(params)

    # Small batch (typical DQN action-selection) and a non-aligned batch that
    # exercises the padding path; both stay tiny.
    for B, k in ((8, k_x1), (37, k_x2)):
        x = jax.random.normal(k, (B, STATE_DIM), jnp.float32)

        out = jax.block_until_ready(qnetwork_forward(x, packed))
        ref = reference_forward(x, params)

        assert out.shape == (B, ACTION_DIM)
        # p0 + p1 == p0 + (1 - p0): sums to 1 up to fp rounding.
        assert jnp.allclose(jnp.sum(out, axis=-1), 1.0, atol=1e-5)
        # Tolerance covers the approx EUP reciprocal and the restructured
        # (padded / diff-form) matmuls vs the plain-XLA reference.
        assert jnp.allclose(out, ref, atol=5e-3, rtol=0.0), (
            f"B={B}: max abs err {float(jnp.max(jnp.abs(out - ref)))}")

    print("KERNEL_OK")
</pallas_src>

<mosaic_0001>
module attributes {stable_mosaic.version = 11 : i64} {
  func.func @qnetwork_kernel(%arg0: i32, %arg1: memref<8x4xf32, #tpu.memory_space<vmem>>, %arg2: memref<280x128xf32, #tpu.memory_space<vmem>>, %arg3: memref<8x8xf32, #tpu.memory_space<vmem>>) attributes {dimension_semantics = [#tpu.dimension_semantics<parallel>], iteration_bounds = array<i64: 1>, scalar_prefetch = 0 : i64, scratch_operands = 0 : i64, tpu.core_type = #tpu.core_type<tc>, window_params = [{transform_indices = @transform_0, window_bounds = array<i64: 8, 4>}, {pipeline_mode = #tpu.pipeline_mode<synchronous>, transform_indices = @transform_1, window_bounds = array<i64: 280, 128>}, {transform_indices = @transform_2, window_bounds = array<i64: 8, 8>}]} {
    %c0 = arith.constant 0 : index
    %c0_0 = arith.constant 0 : index
    %0 = vector.load %arg1[%c0, %c0_0] : memref<8x4xf32, #tpu.memory_space<vmem>>, vector<8x4xf32>
    %c4 = arith.constant 4 : index
    %c0_1 = arith.constant 0 : index
    %1 = vector.load %arg2[%c4, %c0_1] : memref<280x128xf32, #tpu.memory_space<vmem>>, vector<1x128xf32>
    %2 = vector.extract_strided_slice %0 {offsets = [0, 0], sizes = [8, 1], strides = [1, 1]} : vector<8x4xf32> to vector<8x1xf32>
    %c0_2 = arith.constant 0 : index
    %c0_3 = arith.constant 0 : index
    %3 = vector.load %arg2[%c0_2, %c0_3] : memref<280x128xf32, #tpu.memory_space<vmem>>, vector<1x128xf32>
    %4 = vector.broadcast %2 : vector<8x1xf32> to vector<8x128xf32>
    %5 = vector.broadcast %3 : vector<1x128xf32> to vector<8x128xf32>
    %6 = arith.mulf %4, %5 : vector<8x128xf32>
    %7 = vector.broadcast %1 : vector<1x128xf32> to vector<8x128xf32>
    %8 = arith.addf %7, %6 : vector<8x128xf32>
    %9 = vector.extract_strided_slice %0 {offsets = [0, 1], sizes = [8, 1], strides = [1, 1]} : vector<8x4xf32> to vector<8x1xf32>
    %c1 = arith.constant 1 : index
    %c0_4 = arith.constant 0 : index
    %10 = vector.load %arg2[%c1, %c0_4] : memref<280x128xf32, #tpu.memory_space<vmem>>, vector<1x128xf32>
    %11 = vector.broadcast %9 : vector<8x1xf32> to vector<8x128xf32>
    %12 = vector.broadcast %10 : vector<1x128xf32> to vector<8x128xf32>
    %13 = arith.mulf %11, %12 : vector<8x128xf32>
    %14 = arith.addf %8, %13 : vector<8x128xf32>
    %15 = vector.extract_strided_slice %0 {offsets = [0, 2], sizes = [8, 1], strides = [1, 1]} : vector<8x4xf32> to vector<8x1xf32>
    %c2 = arith.constant 2 : index
    %c0_5 = arith.constant 0 : index
    %16 = vector.load %arg2[%c2, %c0_5] : memref<280x128xf32, #tpu.memory_space<vmem>>, vector<1x128xf32>
    %17 = vector.broadcast %15 : vector<8x1xf32> to vector<8x128xf32>
    %18 = vector.broadcast %16 : vector<1x128xf32> to vector<8x128xf32>
    %19 = arith.mulf %17, %18 : vector<8x128xf32>
    %20 = arith.addf %14, %19 : vector<8x128xf32>
    %21 = vector.extract_strided_slice %0 {offsets = [0, 3], sizes = [8, 1], strides = [1, 1]} : vector<8x4xf32> to vector<8x1xf32>
    %c3 = arith.constant 3 : index
    %c0_6 = arith.constant 0 : index
    %22 = vector.load %arg2[%c3, %c0_6] : memref<280x128xf32, #tpu.memory_space<vmem>>, vector<1x128xf32>
    %23 = vector.broadcast %21 : vector<8x1xf32> to vector<8x128xf32>
    %24 = vector.broadcast %22 : vector<1x128xf32> to vector<8x128xf32>
    %25 = arith.mulf %23, %24 : vector<8x128xf32>
    %26 = arith.addf %20, %25 : vector<8x128xf32>
    %cst = arith.constant 0.000000e+00 : f32
    %27 = vector.broadcast %cst : f32 to vector<8x128xf32>
    %28 = arith.maximumf %26, %27 : vector<8x128xf32>
    %c8 = arith.constant 8 : index
    %c0_7 = arith.constant 0 : index
    %29 = vector.load %arg2[%c8, %c0_7] : memref<280x128xf32, #tpu.memory_space<vmem>>, vector<128x128xf32>
    %c136 = arith.constant 136 : index
    %c0_8 = arith.constant 0 : index
    %30 = vector.load %arg2[%c136, %c0_8] : memref<280x128xf32, #tpu.memory_space<vmem>>, vector<1x128xf32>
    %cst_9 = arith.constant dense<0.000000e+00> : vector<8x128xf32>
    %31 = tpu.matmul %28, %29, %cst_9 {dimension_numbers = #tpu.dot_dimension_numbers<[1], [0], [0], [1], [0, 0, 1, 1], [], []>} : vector<8x128xf32>, vector<128x128xf32>, vector<8x128xf32> -> vector<8x128xf32>
    %32 = vector.broadcast %30 : vector<1x128xf32> to vector<8x128xf32>
    %33 = arith.addf %31, %32 : vector<8x128xf32>
    %cst_10 = arith.constant 0.000000e+00 : f32
    %34 = vector.broadcast %cst_10 : f32 to vector<8x128xf32>
    %35 = arith.maximumf %33, %34 : vector<8x128xf32>
    %c144 = arith.constant 144 : index
    %c0_11 = arith.constant 0 : index
    %36 = vector.load %arg2[%c144, %c0_11] : memref<280x128xf32, #tpu.memory_space<vmem>>, vector<128x128xf32>
    %c272 = arith.constant 272 : index
    %c0_12 = arith.constant 0 : index
    %37 = vector.load %arg2[%c272, %c0_12] : memref<280x128xf32, #tpu.memory_space<vmem>>, vector<1x128xf32>
    %cst_13 = arith.constant dense<0.000000e+00> : vector<8x128xf32>
    %38 = tpu.matmul %35, %36, %cst_13 {dimension_numbers = #tpu.dot_dimension_numbers<[1], [0], [0], [1], [0, 0, 1, 1], [], []>} : vector<8x128xf32>, vector<128x128xf32>, vector<8x128xf32> -> vector<8x128xf32>
    %39 = vector.broadcast %37 : vector<1x128xf32> to vector<8x128xf32>
    %40 = arith.addf %38, %39 : vector<8x128xf32>
    %41 = vector.extract_strided_slice %40 {offsets = [0, 0], sizes = [8, 8], strides = [1, 1]} : vector<8x128xf32> to vector<8x8xf32>
    %42 = math.absf %41 : vector<8x8xf32>
    %cst_14 = arith.constant 0.000000e+00 : f32
    %43 = vector.broadcast %cst_14 : f32 to vector<8x8xf32>
    %44 = arith.subf %43, %42 : vector<8x8xf32>
    %45 = math.exp %44 : vector<8x8xf32>
    %cst_15 = arith.constant 1.000000e+00 : f32
    %46 = vector.broadcast %cst_15 : f32 to vector<8x8xf32>
    %47 = arith.addf %46, %45 : vector<8x8xf32>
    %48 = tpu.reciprocal %47 {approx = true} : vector<8x8xf32> -> vector<8x8xf32>
    %cst_16 = arith.constant 0.000000e+00 : f32
    %49 = vector.broadcast %cst_16 : f32 to vector<8x8xf32>
    %50 = arith.cmpf oge, %41, %49 : vector<8x8xf32>
    %cst_17 = arith.constant 1.000000e+00 : f32
    %51 = vector.broadcast %cst_17 : f32 to vector<8x8xf32>
    %52 = arith.select %50, %45, %51 : vector<8x8xi1>, vector<8x8xf32>
    %53 = arith.mulf %52, %48 : vector<8x8xf32>
    %cst_18 = arith.constant 1.000000e+00 : f32
    %54 = vector.broadcast %cst_18 : f32 to vector<8x8xf32>
    %55 = arith.subf %54, %53 : vector<8x8xf32>
    %56 = tpu.iota {dimensions = array<i32: 1>} : vector<8x8xi32>
    %c0_i32 = arith.constant 0 : i32
    %57 = vector.broadcast %c0_i32 : i32 to vector<8x8xi32>
    %58 = arith.cmpi eq, %56, %57 : vector<8x8xi32>
    %59 = arith.select %58, %53, %55 : vector<8x8xi1>, vector<8x8xf32>
    %c0_19 = arith.constant 0 : index
    %c0_20 = arith.constant 0 : index
    %60 = vector.load %arg3[%c0_19, %c0_20] : memref<8x8xf32, #tpu.memory_space<vmem>>, vector<8x8xf32>
    tpu.vector_store %arg3[%c0_19, %c0_20], %59 {strides = array<i32>} : memref<8x8xf32, #tpu.memory_space<vmem>>, vector<8x8xf32>,
    return
  }
  func.func @transform_0(%arg0: i32) -> (i32, i32) {
    %c0_i32 = arith.constant 0 : i32
    %c0_i32_0 = arith.constant 0 : i32
    return %arg0, %c0_i32 : i32, i32
  }
  func.func @transform_1(%arg0: i32) -> (i32, i32) {
    %c0_i32 = arith.constant 0 : i32
    %c0_i32_0 = arith.constant 0 : i32
    %c0_i32_1 = arith.constant 0 : i32
    return %c0_i32, %c0_i32_0 : i32, i32
  }
  func.func @transform_2(%arg0: i32) -> (i32, i32) {
    %c0_i32 = arith.constant 0 : i32
    %c0_i32_0 = arith.constant 0 : i32
    return %arg0, %c0_i32 : i32, i32
  }
}

</mosaic_0001>

<llo_original>
// kernel: qnetwork_forward.1
$region0: #{qnetwork_forward.1}
  #allocation0 [shape = 'u32[]', space=smem, size = 0x4, offset = 0x4, fixed_abs, tag = 'smem constant byte address 0x4 - core index']
  #allocation1 [shape = 'u32[144,128]{1,0:T(1,128)}', space=vmem, size = 0x12000, scoped, tag = 'internal scratch']
  %s0 = inlined_call_operand.vmem [shape: f32[8,4], index: 0, kind: input, shape index: {}]
  %s1 = inlined_call_operand.hbm [shape: f32[280,128], index: 1, kind: input, shape index: {}]
  %s2 = inlined_call_operand.vmem [shape: f32[8,8], index: 2, kind: output, shape index: {}]
  %s3 = sld [smem:[#allocation0]]
  $region22: #{qnetwork_forward.1} parent=0
    _
  %s5 = ssub.s32 1, %s3
  %s6 = scalar_select 0, %s5, %s3
  $region1: #{qnetwork_forward.1} parent=0
    #allocation2 [shape = 'u8[143360]{0}', space=vmem, size = 0x23000, scoped, tag = 'input window, operand 1, single buffered']
    #allocation3 [shape = 's32[1]{0}', space=sflag, size = 0x4, scoped, tag = 'scoped memory for qnetwork_forward.1']
    %7 = vsyncpa [#allocation3], 0
    // Predicated region
    $region2: #{qnetwork_forward.1} parent=1 // pred_check
      _
    $region3: #{qnetwork_forward.1} parent=1 // pred_check_branch
      %9 = sbr.rel (0) target = $region5
    $region4: #{qnetwork_forward.1} parent=1 // pred_region
      _
    $region5: #{qnetwork_forward.1} parent=1 // pred_fallthru
      _
    // Predicated region
    $region6: #{qnetwork_forward.1} parent=1 // pred_check
      _
    $region7: #{qnetwork_forward.1} parent=1 // pred_check_branch
      %11 = sbr.rel (0) target = $region9
    $region8: #{qnetwork_forward.1} parent=1 // pred_region
      %s13 = ssub.s32 4480, 4480
      %14 = vsyncadd [#allocation3], %s13
      %s15 = sshll.u32 [#allocation2], 4
      %s16 = int_to_ptr.vmem [resolvable:$true] %s15
      %21 = dma.hbm_to_vmem [thread:$0]  %s1, 4480, %s16, [#allocation3], 128, 128, 8
    $region9: #{qnetwork_forward.1} parent=1 // pred_fallthru
      _
    // Predicated region
    $region10: #{qnetwork_forward.1} parent=1 // pred_check
      _
    $region11: #{qnetwork_forward.1} parent=1 // pred_check_branch
      %23 = sbr.rel (0) target = $region13
    $region12: #{qnetwork_forward.1} parent=1 // pred_region
      %24 = dma.done [#allocation3], 4480
    $region13: #{qnetwork_forward.1} parent=1 // pred_fallthru
      _
    %v25 = vld [vmem:[%s0] sm:$0xff]
    %v26 = vld [vmem:[#allocation2 + $0x4] sm:$0x1]
    %v27 = vld [vmem:[#allocation2] sm:$0x1]
    %29 = vset.pattern.permute.xlu0 0
    %30 = vperm.xlu0 %29, %v25
    %v31 = vpop.permute.xlu0 %30
    %v33 = vlaneseq
    %v34 = vshrl.u32 %v33, 7
    %v35 = vsub.s32 0, %v34
    %v36 = vrot.slane %v27, %v35
    %v37 = vmul.f32 %v31, %v36
    %v38 = vlaneseq
    %v39 = vshrl.u32 %v38, 7
    %v40 = vsub.s32 0, %v39
    %v41 = vrot.slane %v26, %v40
    %v42 = vadd.f32 %v41, %v37
    %v43 = vld [vmem:[#allocation2 + $0x1] sm:$0x1]
    %44 = vset.pattern.permute.xlu0 1
    %45 = vperm.xlu0 %44, %v25
    %v46 = vpop.permute.xlu0 %45
    %v48 = vlaneseq
    %v49 = vshrl.u32 %v48, 7
    %v50 = vsub.s32 0, %v49
    %v51 = vrot.slane %v43, %v50
    %v52 = vmul.f32 %v46, %v51
    %v53 = vadd.f32 %v42, %v52
    %v54 = vld [vmem:[#allocation2 + $0x2] sm:$0x1]
    %55 = vset.pattern.permute.xlu0 2
    %56 = vperm.xlu0 %55, %v25
    %v57 = vpop.permute.xlu0 %56
    %v59 = vlaneseq
    %v60 = vshrl.u32 %v59, 7
    %v61 = vsub.s32 0, %v60
    %v62 = vrot.slane %v54, %v61
    %v63 = vmul.f32 %v57, %v62
    %v64 = vadd.f32 %v53, %v63
    %v65 = vld [vmem:[#allocation2 + $0x3] sm:$0x1]
    %66 = vset.pattern.permute.xlu0 3
    %67 = vperm.xlu0 %66, %v25
    %v68 = vpop.permute.xlu0 %67
    %v70 = vlaneseq
    %v71 = vshrl.u32 %v70, 7
    %v72 = vsub.s32 0, %v71
    %v73 = vrot.slane %v65, %v72
    %v74 = vmul.f32 %v68, %v73
    %v75 = vadd.f32 %v64, %v74
    %v76 = vmax.f32 %v75, 0.0
    %v77 = vld [vmem:[#allocation2 + $0x8] sm:$0xff]
    %v78 = vld [vmem:[#allocation2 + $0x10] sm:$0xff]
    %v79 = vld [vmem:[#allocation2 + $0x18] sm:$0xff]
    %v80 = vld [vmem:[#allocation2 + $0x20] sm:$0xff]
    %v81 = vld [vmem:[#allocation2 + $0x28] sm:$0xff]
    %v82 = vld [vmem:[#allocation2 + $0x30] sm:$0xff]
    %v83 = vld [vmem:[#allocation2 + $0x38] sm:$0xff]
    %v84 = vld [vmem:[#allocation2 + $0x40] sm:$0xff]
    %v85 = vld [vmem:[#allocation2 + $0x48] sm:$0xff]
    %v86 = vld [vmem:[#allocation2 + $0x50] sm:$0xff]
    %v87 = vld [vmem:[#allocation2 + $0x58] sm:$0xff]
    %v88 = vld [vmem:[#allocation2 + $0x60] sm:$0xff]
    %v89 = vld [vmem:[#allocation2 + $0x68] sm:$0xff]
    %v90 = vld [vmem:[#allocation2 + $0x70] sm:$0xff]
    %v91 = vld [vmem:[#allocation2 + $0x78] sm:$0xff]
    %v92 = vld [vmem:[#allocation2 + $0x80] sm:$0xff]
    %v93 = vld [vmem:[#allocation2 + $0x88] sm:$0x1]
    %v94 = vlaneseq
    %v95 = vshrl.u32 %v94, 7
    %v96 = vsub.s32 0, %v95
    %v97 = vrot.slane %v93, %v96
    %98 = vmatprep.subr.mxu0 0.0
    %99 = vmatpush1.msra.mxu0 %v77
    %100 = vmatprep.subr.mxu0 0.0
    %101 = vmatpush1.msra.mxu0 %v78
    %102 = vmatprep.subr.mxu0 0.0
    %103 = vmatpush1.msra.mxu0 %v79
    %104 = vmatprep.subr.mxu0 0.0
    %105 = vmatpush1.msra.mxu0 %v80
    %106 = vmatprep.subr.mxu0 0.0
    %107 = vmatpush1.msra.mxu0 %v81
    %108 = vmatprep.subr.mxu0 0.0
    %109 = vmatpush1.msra.mxu0 %v82
    %110 = vmatprep.subr.mxu0 0.0
    %111 = vmatpush1.msra.mxu0 %v83
    %112 = vmatprep.subr.mxu0 0.0
    %113 = vmatpush1.msra.mxu0 %v84
    %114 = vmatprep.subr.mxu0 0.0
    %115 = vmatpush1.msra.mxu0 %v85
    %116 = vmatprep.subr.mxu0 0.0
    %117 = vmatpush1.msra.mxu0 %v86
    %118 = vmatprep.subr.mxu0 0.0
    %119 = vmatpush1.msra.mxu0 %v87
    %120 = vmatprep.subr.mxu0 0.0
    %121 = vmatpush1.msra.mxu0 %v88
    %122 = vmatprep.subr.mxu0 0.0
    %123 = vmatpush1.msra.mxu0 %v89
    %124 = vmatprep.subr.mxu0 0.0
    %125 = vmatpush1.msra.mxu0 %v90
    %126 = vmatprep.subr.mxu0 0.0
    %127 = vmatpush1.msra.mxu0 %v91
    %128 = vmatprep.subr.mxu0 0.0
    %129 = vmatpush1.msra.mxu0 %v92
    %130 = vmatprep.subr.mxu0 0.0
    %131 = vmatpush1.msra.mxu0 0.0
    %132 = vmatprep.subr.mxu0 0.0
    %133 = vmatpush1.msra.mxu0 0.0
    %134 = vmatprep.subr.mxu0 0.0
    %135 = vmatpush1.msra.mxu0 0.0
    %136 = vmatprep.subr.mxu0 0.0
    %137 = vmatpush1.msra.mxu0 0.0
    %138 = vmatprep.subr.mxu0 0.0
    %139 = vmatpush1.msra.mxu0 0.0
    %140 = vmatprep.subr.mxu0 0.0
    %141 = vmatpush1.msra.mxu0 0.0
    %142 = vmatprep.subr.mxu0 0.0
    %143 = vmatpush1.msra.mxu0 0.0
    %144 = vmatprep.subr.mxu0 0.0
    %145 = vmatpush1.msra.mxu0 0.0
    %146 = vmatprep.subr.mxu0 0.0
    %147 = vmatpush1.msra.mxu0 0.0
    %148 = vmatprep.subr.mxu0 0.0
    %149 = vmatpush1.msra.mxu0 0.0
    %150 = vmatprep.subr.mxu0 0.0
    %151 = vmatpush1.msra.mxu0 0.0
    %152 = vmatprep.subr.mxu0 0.0
    %153 = vmatpush1.msra.mxu0 0.0
    %154 = vmatprep.subr.mxu0 0.0
    %155 = vmatpush1.msra.mxu0 0.0
    %156 = vmatprep.subr.mxu0 0.0
    %157 = vmatpush1.msra.mxu0 0.0
    %158 = vmatprep.subr.mxu0 0.0
    %159 = vmatpush1.msra.mxu0 0.0
    %160 = vmatprep.subr.mxu0 0.0
    %161 = vmatpush1.msra.mxu0 0.0
    %162 = vmatprep.mubr.f32.mxu0 0.0
    %163 = vmatmul.mubr.f32.gmra.mrb[0].mxu0 %v76
    %v164 = vpop.f32.mrb[0].mxu0
    %v165 = vadd.f32 %v97, %v164
    %v166 = vpop.f32.mrb[0].mxu0
    %167 = vdwg.mxu0
    %v168 = vmax.f32 %v165, 0.0
    %v169 = vld [vmem:[#allocation2 + $0x90] sm:$0xff]
    %v170 = vld [vmem:[#allocation2 + $0x98] sm:$0xff]
    %v171 = vld [vmem:[#allocation2 + $0xa0] sm:$0xff]
    %v172 = vld [vmem:[#allocation2 + $0xa8] sm:$0xff]
    %v173 = vld [vmem:[#allocation2 + $0xb0] sm:$0xff]
    %v174 = vld [vmem:[#allocation2 + $0xb8] sm:$0xff]
    %v175 = vld [vmem:[#allocation2 + $0xc0] sm:$0xff]
    %v176 = vld [vmem:[#allocation2 + $0xc8] sm:$0xff]
    %v177 = vld [vmem:[#allocation2 + $0xd0] sm:$0xff]
    %v178 = vld [vmem:[#allocation2 + $0xd8] sm:$0xff]
    %v179 = vld [vmem:[#allocation2 + $0xe0] sm:$0xff]
    %v180 = vld [vmem:[#allocation2 + $0xe8] sm:$0xff]
    %v181 = vld [vmem:[#allocation2 + $0xf0] sm:$0xff]
    %v182 = vld [vmem:[#allocation2 + $0xf8] sm:$0xff]
    %v183 = vld [vmem:[#allocation2 + $0x100] sm:$0xff]
    %v184 = vld [vmem:[#allocation2 + $0x108] sm:$0xff]
    %v185 = vld [vmem:[#allocation2 + $0x110] sm:$0x1]
    %v186 = vlaneseq
    %v187 = vshrl.u32 %v186, 7
    %v188 = vsub.s32 0, %v187
    %v189 = vrot.slane %v185, %v188
    %190 = vmatprep.subr.mxu0 0.0
    %191 = vmatpush1.msra.mxu0 %v169
    %192 = vmatprep.subr.mxu0 0.0
    %193 = vmatpush1.msra.mxu0 %v170
    %194 = vmatprep.subr.mxu0 0.0
    %195 = vmatpush1.msra.mxu0 %v171
    %196 = vmatprep.subr.mxu0 0.0
    %197 = vmatpush1.msra.mxu0 %v172
    %198 = vmatprep.subr.mxu0 0.0
    %199 = vmatpush1.msra.mxu0 %v173
    %200 = vmatprep.subr.mxu0 0.0
    %201 = vmatpush1.msra.mxu0 %v174
    %202 = vmatprep.subr.mxu0 0.0
    %203 = vmatpush1.msra.mxu0 %v175
    %204 = vmatprep.subr.mxu0 0.0
    %205 = vmatpush1.msra.mxu0 %v176
    %206 = vmatprep.subr.mxu0 0.0
    %207 = vmatpush1.msra.mxu0 %v177
    %208 = vmatprep.subr.mxu0 0.0
    %209 = vmatpush1.msra.mxu0 %v178
    %210 = vmatprep.subr.mxu0 0.0
    %211 = vmatpush1.msra.mxu0 %v179
    %212 = vmatprep.subr.mxu0 0.0
    %213 = vmatpush1.msra.mxu0 %v180
    %214 = vmatprep.subr.mxu0 0.0
    %215 = vmatpush1.msra.mxu0 %v181
    %216 = vmatprep.subr.mxu0 0.0
    %217 = vmatpush1.msra.mxu0 %v182
    %218 = vmatprep.subr.mxu0 0.0
    %219 = vmatpush1.msra.mxu0 %v183
    %220 = vmatprep.subr.mxu0 0.0
    %221 = vmatpush1.msra.mxu0 %v184
    %222 = vmatprep.subr.mxu0 0.0
    %223 = vmatpush1.msra.mxu0 0.0
    %224 = vmatprep.subr.mxu0 0.0
    %225 = vmatpush1.msra.mxu0 0.0
    %226 = vmatprep.subr.mxu0 0.0
    %227 = vmatpush1.msra.mxu0 0.0
    %228 = vmatprep.subr.mxu0 0.0
    %229 = vmatpush1.msra.mxu0 0.0
    %230 = vmatprep.subr.mxu0 0.0
    %231 = vmatpush1.msra.mxu0 0.0
    %232 = vmatprep.subr.mxu0 0.0
    %233 = vmatpush1.msra.mxu0 0.0
    %234 = vmatprep.subr.mxu0 0.0
    %235 = vmatpush1.msra.mxu0 0.0
    %236 = vmatprep.subr.mxu0 0.0
    %237 = vmatpush1.msra.mxu0 0.0
    %238 = vmatprep.subr.mxu0 0.0
    %239 = vmatpush1.msra.mxu0 0.0
    %240 = vmatprep.subr.mxu0 0.0
    %241 = vmatpush1.msra.mxu0 0.0
    %242 = vmatprep.subr.mxu0 0.0
    %243 = vmatpush1.msra.mxu0 0.0
    %244 = vmatprep.subr.mxu0 0.0
    %245 = vmatpush1.msra.mxu0 0.0
    %246 = vmatprep.subr.mxu0 0.0
    %247 = vmatpush1.msra.mxu0 0.0
    %248 = vmatprep.subr.mxu0 0.0
    %249 = vmatpush1.msra.mxu0 0.0
    %250 = vmatprep.subr.mxu0 0.0
    %251 = vmatpush1.msra.mxu0 0.0
    %252 = vmatprep.subr.mxu0 0.0
    %253 = vmatpush1.msra.mxu0 0.0
    %254 = vmatprep.mubr.f32.mxu0 0.0
    %255 = vmatmul.mubr.f32.gmra.mrb[0].mxu0 %v168
    %v256 = vpop.f32.mrb[0].mxu0
    %v257 = vadd.f32 %v189, %v256
    %v258 = vpop.f32.mrb[0].mxu0
    %259 = vdwg.mxu0
    %v260 = vand.u32 2147483647, %v257
    %v261 = vsub.f32 0.0, %v260
    %v262 = vmul.f32 %v261, 1.442695
    %v263 = vpow.pop %v262
    %v264 = vadd.f32 %v263, 1.0
    %v265 = vrcp.pop %v264
    %vm266 = vcmp.ge.f32.partialorder %v257, 0.0
    %v267 = vsel %vm266, %v263, 1.0
    %v268 = vmul.f32 %v267, %v265
    %v269 = vsub.f32 1.0, %v268
    %v270 = vlaneseq
    %v271 = vand.u32 %v270, 127
    %vm272 = vcmp.eq.s32.totalorder %v271, 0
    %v273 = vsel %vm272, %v268, %v269
    %vm274 = vcmask 64512
    %275 = vst.msk [vmem:[%s2] sm:$0xff] %vm274, %v273
    // Predicated region
    $region14: #{qnetwork_forward.1} parent=1 // pred_check
      _
    $region15: #{qnetwork_forward.1} parent=1 // pred_check_branch
      %277 = sbr.rel (0) target = $region17
    $region16: #{qnetwork_forward.1} parent=1 // pred_region
      _
    $region17: #{qnetwork_forward.1} parent=1 // pred_fallthru
      _
    // Predicated region
    $region18: #{qnetwork_forward.1} parent=1 // pred_check
      _
    $region19: #{qnetwork_forward.1} parent=1 // pred_check_branch
      %279 = sbr.rel (0) target = $region21
    $region20: #{qnetwork_forward.1} parent=1 // pred_region
      _
    $region21: #{qnetwork_forward.1} parent=1 // pred_fallthru
      _
    %280 = vsyncpa [#allocation3], 1

</llo_original>
